<compile_context>
chip_gen: v5e
topology: v5e:2x2
jax: 0.10.0
libtpu: 0.0.40
codegen_flags: <defaults>
</compile_context>

<pallas_src>
import jax
import jax.numpy as jnp
from jax.experimental import pallas as pl
from jax.experimental.pallas import tpu as pltpu


def _round_up(x, m):
    return ((x + m - 1) // m) * m


def mlp_kernel(x_ref,
               w1_ref, b1_ref,
               w2_ref, b2_ref,
               w3_ref, b3_ref,
               o_ref):
    # Matmul-operand dtype (bf16 by default, f32 optional); accumulation is
    # always f32 and the elementwise path (bias add, ReLU, tanh) stays f32.
    mm_dtype = w1_ref.dtype

    # Layer 1: Linear + ReLU
    h = jnp.dot(x_ref[...], w1_ref[...], preferred_element_type=jnp.float32)
    h = jnp.maximum(h + b1_ref[...], 0.0)
    # Layer 2: Linear + Tanh
    h = jnp.dot(h.astype(mm_dtype), w2_ref[...], preferred_element_type=jnp.float32)
    h = jnp.tanh(h + b2_ref[...])
    # Layer 3: Linear + ReLU  (native 16-wide output; block spans the full last
    # dim of the output array -> contiguous HBM writeback, minimal bytes)
    h = jnp.dot(h.astype(mm_dtype), w3_ref[...], preferred_element_type=jnp.float32)
    h = jnp.maximum(h + b3_ref[...], 0.0)
    o_ref[...] = h.astype(o_ref.dtype)


def _pick_tile_b(B, cap, *, align=16, split_threshold=256):
    """Pick the batch tile size.

    - Small batches: a single block equal to the full batch (always a legal
      block shape, no padding, no masked edge).
    - Larger batches: at least two tiles so the "parallel" batch axis can shard
      across v7x's two TensorCores, capped at `cap` rows so per-step VMEM stays
      a few MiB on every generation.  The grid uses cdiv, so B is never padded;
      the ragged last block is masked by Pallas on writeback.
    """
    if B <= split_threshold:
        return B
    half = _round_up((B + 1) // 2, align)          # aim for >= 2 grid steps
    return max(align, min(_round_up(cap, align), half))


def mlp_forward(x, params, *, tile_b=2048, use_bf16=True):
    """x: [B, input_size] f32. params: list of (w [in,out] f32, b [1,out] f32)."""
    B, in_dim = x.shape
    (w1, b1), (w2, b2), (w3, b3) = params
    h1, h2, out_dim = w1.shape[1], w2.shape[1], w3.shape[1]

    # --- bf16 MXU operands (default); biases & accumulation stay f32. ---
    mm_dtype = jnp.bfloat16 if use_bf16 else jnp.float32
    x_mm = x.astype(mm_dtype)
    w1m = w1.astype(mm_dtype)
    w2m = w2.astype(mm_dtype)
    w3m = w3.astype(mm_dtype)

    # --- Batch tiling: big tiles, cdiv grid, no padding of x or the output. ---
    tb = _pick_tile_b(B, tile_b)
    grid = (pl.cdiv(B, tb),)

    def x_map(i):
        return (i, 0)

    def resident(i):            # constant block index -> loaded once, kept resident
        return (0, 0)

    itemsize = x_mm.dtype.itemsize
    cost = pl.CostEstimate(
        flops=2 * B * (in_dim * h1 + h1 * h2 + h2 * out_dim),
        transcendentals=B * h2,                       # tanh
        bytes_accessed=(B * in_dim * itemsize
                        + (in_dim * h1 + h1 * h2 + h2 * out_dim) * itemsize
                        + (h1 + h2 + out_dim) * 4
                        + B * out_dim * 4),
    )

    out = pl.pallas_call(
        mlp_kernel,
        out_shape=jax.ShapeDtypeStruct((B, out_dim), jnp.float32),
        grid_spec=pltpu.PrefetchScalarGridSpec(
            num_scalar_prefetch=0,
            grid=grid,
            in_specs=[
                pl.BlockSpec((tb, in_dim), x_map),
                pl.BlockSpec(w1m.shape, resident),
                pl.BlockSpec(b1.shape, resident),
                pl.BlockSpec(w2m.shape, resident),
                pl.BlockSpec(b2.shape, resident),
                pl.BlockSpec(w3m.shape, resident),
                pl.BlockSpec(b3.shape, resident),
            ],
            out_specs=pl.BlockSpec((tb, out_dim), x_map),
        ),
        compiler_params=pltpu.CompilerParams(
            dimension_semantics=("parallel",)),   # batch axis shards across TCs
        cost_estimate=cost,
    )(x_mm, w1m, b1, w2m, b2, w3m, b3)
    return out


def init_params(key, input_size, layer_sizes):
    """Deterministic nn.Linear-style init: U(-1/sqrt(fan_in), 1/sqrt(fan_in))."""
    params = []
    prev = input_size
    for size in layer_sizes:
        key, kw, kb = jax.random.split(key, 3)
        bound = 1.0 / jnp.sqrt(prev)
        # stored as [in, out] == PyTorch weight.T  (y = x @ W.T + b)
        w = jax.random.uniform(kw, (prev, size), jnp.float32, -bound, bound)
        b = jax.random.uniform(kb, (1, size), jnp.float32, -bound, bound)
        params.append((w, b))
        prev = size
    return params


def mlp_reference(x, params):
    (w1, b1), (w2, b2), (w3, b3) = params
    h = jnp.maximum(x @ w1 + b1, 0.0)
    h = jnp.tanh(h @ w2 + b2)
    h = jnp.maximum(h @ w3 + b3, 0.0)
    return h


if __name__ == "__main__":
    INPUT_SIZE = 32
    LAYER_SIZES = [64, 64, 16]

    key = jax.random.PRNGKey(0)
    key, kx = jax.random.split(key)
    params = init_params(key, INPUT_SIZE, LAYER_SIZES)

    # Case 1: small batch, default bf16-operand fast path (single full-dim block).
    B = 16
    x = jax.random.normal(kx, (B, INPUT_SIZE), jnp.float32)
    ref = mlp_reference(x, params)
    out = jax.block_until_ready(mlp_forward(x, params))
    assert out.shape == (B, LAYER_SIZES[-1])
    assert jnp.allclose(out, ref, atol=5e-2, rtol=5e-2), "bf16 mismatch vs reference"

    # Case 2: f32 matmul-operand path (closest to the PyTorch float32 forward).
    out_f32 = jax.block_until_ready(mlp_forward(x, params, use_bf16=False))
    assert jnp.allclose(out_f32, ref, atol=1e-5, rtol=1e-5), "f32 mismatch vs reference"

    # Case 3: ragged multi-tile batch (grid > 1, masked edge block, no padding).
    B3 = 300
    key, kx3 = jax.random.split(key)
    x3 = jax.random.normal(kx3, (B3, INPUT_SIZE), jnp.float32)
    out3 = jax.block_until_ready(mlp_forward(x3, params, tile_b=128))
    assert out3.shape == (B3, LAYER_SIZES[-1])
    assert jnp.allclose(out3, mlp_reference(x3, params), atol=5e-2, rtol=5e-2), \
        "ragged multi-tile mismatch vs reference"

    # Case 4: tiny ragged batch (B not a multiple of 8) -> single full-dim block.
    x4 = x[:13]
    out4 = jax.block_until_ready(mlp_forward(x4, params))
    assert out4.shape == (13, LAYER_SIZES[-1])
    assert jnp.allclose(out4, mlp_reference(x4, params), atol=5e-2, rtol=5e-2), \
        "tiny ragged batch mismatch vs reference"

    print("KERNEL_OK")
</pallas_src>

<mosaic_0001>
module attributes {stable_mosaic.version = 11 : i64} {
  func.func @mlp_kernel(%arg0: i32, %arg1: memref<16x32xbf16, #tpu.memory_space<vmem>>, %arg2: memref<32x64xbf16, #tpu.memory_space<vmem>>, %arg3: memref<1x64xf32, #tpu.memory_space<vmem>>, %arg4: memref<64x64xbf16, #tpu.memory_space<vmem>>, %arg5: memref<1x64xf32, #tpu.memory_space<vmem>>, %arg6: memref<64x16xbf16, #tpu.memory_space<vmem>>, %arg7: memref<1x16xf32, #tpu.memory_space<vmem>>, %arg8: memref<16x16xf32, #tpu.memory_space<vmem>>) attributes {dimension_semantics = [#tpu.dimension_semantics<parallel>], iteration_bounds = array<i64: 1>, scalar_prefetch = 0 : i64, scratch_operands = 0 : i64, tpu.core_type = #tpu.core_type<tc>, window_params = [{transform_indices = @transform_0, window_bounds = array<i64: 16, 32>}, {pipeline_mode = #tpu.pipeline_mode<synchronous>, transform_indices = @transform_1, window_bounds = array<i64: 32, 64>}, {pipeline_mode = #tpu.pipeline_mode<synchronous>, transform_indices = @transform_2, window_bounds = array<i64: 1, 64>}, {pipeline_mode = #tpu.pipeline_mode<synchronous>, transform_indices = @transform_3, window_bounds = array<i64: 64, 64>}, {pipeline_mode = #tpu.pipeline_mode<synchronous>, transform_indices = @transform_4, window_bounds = array<i64: 1, 64>}, {pipeline_mode = #tpu.pipeline_mode<synchronous>, transform_indices = @transform_5, window_bounds = array<i64: 64, 16>}, {pipeline_mode = #tpu.pipeline_mode<synchronous>, transform_indices = @transform_6, window_bounds = array<i64: 1, 16>}, {transform_indices = @transform_7, window_bounds = array<i64: 16, 16>}]} {
    %c0 = arith.constant 0 : index
    %c0_0 = arith.constant 0 : index
    %0 = vector.load %arg1[%c0, %c0_0] : memref<16x32xbf16, #tpu.memory_space<vmem>>, vector<16x32xbf16>
    %c0_1 = arith.constant 0 : index
    %c0_2 = arith.constant 0 : index
    %1 = vector.load %arg2[%c0_1, %c0_2] : memref<32x64xbf16, #tpu.memory_space<vmem>>, vector<32x64xbf16>
    %cst = arith.constant dense<0.000000e+00> : vector<16x64xf32>
    %2 = tpu.matmul %0, %1, %cst {dimension_numbers = #tpu.dot_dimension_numbers<[1], [0], [0], [1], [0, 0, 1, 1], [], []>} : vector<16x32xbf16>, vector<32x64xbf16>, vector<16x64xf32> -> vector<16x64xf32>
    %c0_3 = arith.constant 0 : index
    %c0_4 = arith.constant 0 : index
    %3 = vector.load %arg3[%c0_3, %c0_4] : memref<1x64xf32, #tpu.memory_space<vmem>>, vector<1x64xf32>
    %4 = vector.broadcast %3 : vector<1x64xf32> to vector<16x64xf32>
    %5 = arith.addf %2, %4 : vector<16x64xf32>
    %cst_5 = arith.constant 0.000000e+00 : f32
    %6 = vector.broadcast %cst_5 : f32 to vector<16x64xf32>
    %7 = arith.maximumf %5, %6 : vector<16x64xf32>
    %8 = arith.truncf %7 : vector<16x64xf32> to vector<16x64xbf16>
    %c0_6 = arith.constant 0 : index
    %c0_7 = arith.constant 0 : index
    %9 = vector.load %arg4[%c0_6, %c0_7] : memref<64x64xbf16, #tpu.memory_space<vmem>>, vector<64x64xbf16>
    %cst_8 = arith.constant dense<0.000000e+00> : vector<16x64xf32>
    %10 = tpu.matmul %8, %9, %cst_8 {dimension_numbers = #tpu.dot_dimension_numbers<[1], [0], [0], [1], [0, 0, 1, 1], [], []>} : vector<16x64xbf16>, vector<64x64xbf16>, vector<16x64xf32> -> vector<16x64xf32>
    %c0_9 = arith.constant 0 : index
    %c0_10 = arith.constant 0 : index
    %11 = vector.load %arg5[%c0_9, %c0_10] : memref<1x64xf32, #tpu.memory_space<vmem>>, vector<1x64xf32>
    %12 = vector.broadcast %11 : vector<1x64xf32> to vector<16x64xf32>
    %13 = arith.addf %10, %12 : vector<16x64xf32>
    %14 = math.tanh %13 : vector<16x64xf32>
    %15 = arith.truncf %14 : vector<16x64xf32> to vector<16x64xbf16>
    %c0_11 = arith.constant 0 : index
    %c0_12 = arith.constant 0 : index
    %16 = vector.load %arg6[%c0_11, %c0_12] : memref<64x16xbf16, #tpu.memory_space<vmem>>, vector<64x16xbf16>
    %cst_13 = arith.constant dense<0.000000e+00> : vector<16x16xf32>
    %17 = tpu.matmul %15, %16, %cst_13 {dimension_numbers = #tpu.dot_dimension_numbers<[1], [0], [0], [1], [0, 0, 1, 1], [], []>} : vector<16x64xbf16>, vector<64x16xbf16>, vector<16x16xf32> -> vector<16x16xf32>
    %c0_14 = arith.constant 0 : index
    %c0_15 = arith.constant 0 : index
    %18 = vector.load %arg7[%c0_14, %c0_15] : memref<1x16xf32, #tpu.memory_space<vmem>>, vector<1x16xf32>
    %19 = vector.broadcast %18 : vector<1x16xf32> to vector<16x16xf32>
    %20 = arith.addf %17, %19 : vector<16x16xf32>
    %cst_16 = arith.constant 0.000000e+00 : f32
    %21 = vector.broadcast %cst_16 : f32 to vector<16x16xf32>
    %22 = arith.maximumf %20, %21 : vector<16x16xf32>
    %c0_17 = arith.constant 0 : index
    %c0_18 = arith.constant 0 : index
    %23 = vector.load %arg8[%c0_17, %c0_18] : memref<16x16xf32, #tpu.memory_space<vmem>>, vector<16x16xf32>
    tpu.vector_store %arg8[%c0_17, %c0_18], %22 {strides = array<i32>} : memref<16x16xf32, #tpu.memory_space<vmem>>, vector<16x16xf32>,
    return
  }
  func.func @transform_0(%arg0: i32) -> (i32, i32) {
    %c0_i32 = arith.constant 0 : i32
    %c0_i32_0 = arith.constant 0 : i32
    return %arg0, %c0_i32 : i32, i32
  }
  func.func @transform_1(%arg0: i32) -> (i32, i32) {
    %c0_i32 = arith.constant 0 : i32
    %c0_i32_0 = arith.constant 0 : i32
    %c0_i32_1 = arith.constant 0 : i32
    return %c0_i32, %c0_i32_0 : i32, i32
  }
  func.func @transform_2(%arg0: i32) -> (i32, i32) {
    %c0_i32 = arith.constant 0 : i32
    %c0_i32_0 = arith.constant 0 : i32
    %c0_i32_1 = arith.constant 0 : i32
    return %c0_i32, %c0_i32_0 : i32, i32
  }
  func.func @transform_3(%arg0: i32) -> (i32, i32) {
    %c0_i32 = arith.constant 0 : i32
    %c0_i32_0 = arith.constant 0 : i32
    %c0_i32_1 = arith.constant 0 : i32
    return %c0_i32, %c0_i32_0 : i32, i32
  }
  func.func @transform_4(%arg0: i32) -> (i32, i32) {
    %c0_i32 = arith.constant 0 : i32
    %c0_i32_0 = arith.constant 0 : i32
    %c0_i32_1 = arith.constant 0 : i32
    return %c0_i32, %c0_i32_0 : i32, i32
  }
  func.func @transform_5(%arg0: i32) -> (i32, i32) {
    %c0_i32 = arith.constant 0 : i32
    %c0_i32_0 = arith.constant 0 : i32
    %c0_i32_1 = arith.constant 0 : i32
    return %c0_i32, %c0_i32_0 : i32, i32
  }
  func.func @transform_6(%arg0: i32) -> (i32, i32) {
    %c0_i32 = arith.constant 0 : i32
    %c0_i32_0 = arith.constant 0 : i32
    %c0_i32_1 = arith.constant 0 : i32
    return %c0_i32, %c0_i32_0 : i32, i32
  }
  func.func @transform_7(%arg0: i32) -> (i32, i32) {
    %c0_i32 = arith.constant 0 : i32
    %c0_i32_0 = arith.constant 0 : i32
    return %arg0, %c0_i32 : i32, i32
  }
}

</mosaic_0001>

<llo_original>
// kernel: tpu_custom_call.1
$region0: #{tpu_custom_call.1}
  #allocation0 [shape = 'u32[]', space=smem, size = 0x4, offset = 0x4, fixed_abs, tag = 'smem constant byte address 0x4 - core index']
  #allocation1 [shape = 'u32[72,128]{1,0:T(1,128)}', space=vmem, size = 0x9000, scoped, tag = 'internal scratch']
  %s0 = inlined_call_operand.vmem [shape: bf16[16,32], index: 0, kind: input, shape index: {}]
  %s1 = inlined_call_operand.hbm [shape: bf16[32,64], index: 1, kind: input, shape index: {}]
  %s2 = inlined_call_operand.vmem [shape: f32[1,64], index: 2, kind: input, shape index: {}]
  %s3 = inlined_call_operand.vmem [shape: bf16[64,64], index: 3, kind: input, shape index: {}]
  %s4 = inlined_call_operand.vmem [shape: f32[1,64], index: 4, kind: input, shape index: {}]
  %s5 = inlined_call_operand.vmem [shape: bf16[64,16], index: 5, kind: input, shape index: {}]
  %s6 = inlined_call_operand.vmem [shape: f32[1,16], index: 6, kind: input, shape index: {}]
  %s7 = inlined_call_operand.hbm [shape: f32[16,16], index: 7, kind: output, shape index: {}]
  %s8 = sld [smem:[#allocation0]]
  $region42: #{tpu_custom_call.1} parent=0
    _
  %s10 = ssub.s32 1, %s8
  %s11 = scalar_select 0, %s10, %s8
  $region1: #{tpu_custom_call.1} parent=0
    #allocation2 [shape = 'u8[8192]{0}', space=vmem, size = 0x2000, scoped, tag = 'input window, operand 1, single buffered']
    #allocation3 [shape = 's32[1]{0}', space=sflag, size = 0x4, scoped, tag = 'scoped memory for tpu_custom_call.1']
    #allocation4 [shape = 's32[1]{0}', space=sflag, size = 0x4, scoped, tag = 'scoped memory for tpu_custom_call.1']
    #allocation5 [shape = 'u8[8192]{0}', space=vmem, size = 0x2000, scoped, tag = 'output window, operand 0, single buffered']
    %12 = vsyncpa [#allocation3], 0
    %13 = vsyncpa [#allocation4], 0
    // Predicated region
    $region2: #{tpu_custom_call.1} parent=1 // pred_check
      _
    $region3: #{tpu_custom_call.1} parent=1 // pred_check_branch
      %15 = sbr.rel (0) target = $region5
    $region4: #{tpu_custom_call.1} parent=1 // pred_region
      _
    $region5: #{tpu_custom_call.1} parent=1 // pred_fallthru
      _
    // Predicated region
    $region6: #{tpu_custom_call.1} parent=1 // pred_check
      _
    $region7: #{tpu_custom_call.1} parent=1 // pred_check_branch
      %17 = sbr.rel (0) target = $region9
    $region8: #{tpu_custom_call.1} parent=1 // pred_region
      %19 = vsyncadd [#allocation3], 0
      %s20 = sshll.u32 %s1, 4
      %s21 = int_to_ptr.hbm [resolvable:$true] %s20
      %s22 = sshll.u32 [#allocation2], 4
      %s23 = int_to_ptr.vmem [resolvable:$true] %s22
      %28 = dma.hbm_to_vmem [thread:$0]  %s21, 256, %s23, [#allocation3], 64, 64, 4
    $region9: #{tpu_custom_call.1} parent=1 // pred_fallthru
      _
    // Predicated region
    $region10: #{tpu_custom_call.1} parent=1 // pred_check
      _
    $region11: #{tpu_custom_call.1} parent=1 // pred_check_branch
      %30 = sbr.rel (0) target = $region13
    $region12: #{tpu_custom_call.1} parent=1 // pred_region
      _
    $region13: #{tpu_custom_call.1} parent=1 // pred_fallthru
      _
    // Predicated region
    $region14: #{tpu_custom_call.1} parent=1 // pred_check
      _
    $region15: #{tpu_custom_call.1} parent=1 // pred_check_branch
      %32 = sbr.rel (0) target = $region17
    $region16: #{tpu_custom_call.1} parent=1 // pred_region
      _
    $region17: #{tpu_custom_call.1} parent=1 // pred_fallthru
      _
    // Predicated region
    $region18: #{tpu_custom_call.1} parent=1 // pred_check
      _
    $region19: #{tpu_custom_call.1} parent=1 // pred_check_branch
      %34 = sbr.rel (0) target = $region21
    $region20: #{tpu_custom_call.1} parent=1 // pred_region
      _
    $region21: #{tpu_custom_call.1} parent=1 // pred_fallthru
      _
    // Predicated region
    $region22: #{tpu_custom_call.1} parent=1 // pred_check
      _
    $region23: #{tpu_custom_call.1} parent=1 // pred_check_branch
      %36 = sbr.rel (0) target = $region25
    $region24: #{tpu_custom_call.1} parent=1 // pred_region
      _
    $region25: #{tpu_custom_call.1} parent=1 // pred_fallthru
      _
    // Predicated region
    $region26: #{tpu_custom_call.1} parent=1 // pred_check
      _
    $region27: #{tpu_custom_call.1} parent=1 // pred_check_branch
      %38 = sbr.rel (0) target = $region29
    $region28: #{tpu_custom_call.1} parent=1 // pred_region
      _
    $region29: #{tpu_custom_call.1} parent=1 // pred_fallthru
      _
    // Predicated region
    $region30: #{tpu_custom_call.1} parent=1 // pred_check
      _
    $region31: #{tpu_custom_call.1} parent=1 // pred_check_branch
      %40 = sbr.rel (0) target = $region33
    $region32: #{tpu_custom_call.1} parent=1 // pred_region
      %42 = dma.done [#allocation3], 256
    $region33: #{tpu_custom_call.1} parent=1 // pred_fallthru
      _
    %v44 = vld [vmem:[%s0] sm:$0xf]
    %v45 = vld [vmem:[%s0 + $0x4] sm:$0xf]
    %v46 = vld [vmem:[#allocation2] sm:$0xf]
    %v47 = vld [vmem:[#allocation2 + $0x4] sm:$0xf]
    %v48 = vld [vmem:[#allocation2 + $0x8] sm:$0xf]
    %v49 = vld [vmem:[#allocation2 + $0xc] sm:$0xf]
    %v50 = vld [vmem:[%s2] sm:$0x1]
    %v52 = vperm.slane %v50, 0
    %v56 = vunpack.c.l.b16 %v44
    %v57 = vunpack.c.l.b16 %v45
    %v58 = vpack.c.b16 %v57, %v56
    %v63 = vunpack.c.l.b16 %v46
    %v64 = vunpack.c.l.b16 %v47
    %v65 = vunpack.c.l.b16 %v48
    %v66 = vunpack.c.l.b16 %v49
    %v67 = vpack.c.b16 %v64, %v63
    %v68 = vpack.c.b16 %v66, %v65
    %vm71 = vcmask 261120
    %v73 = vsel %vm71, %v58, 0
    %75 = vmatpush.bf16.msra.mxu0 0
    %76 = vmatpush.bf16.msra.mxu0 0
    %77 = vmatpush.bf16.msra.mxu0 0
    %78 = vmatpush.bf16.msra.mxu0 0
    %79 = vmatpush.bf16.msra.mxu0 0
    %80 = vmatpush.bf16.msra.mxu0 0
    %81 = vmatpush.bf16.msra.mxu0 %v68
    %82 = vmatpush.bf16.msra.mxu0 %v67
    %83 = vmatmul.bf16.gmra.mxu0 %v73
    %v84 = vpop.f32.mrf.mxu0
    %v85 = vadd.f32 %v52, %v84
    %v86 = vpop.f32.mrf.mxu0
    %v87 = vadd.f32 %v52, %v86
    %88 = vdwg.mxu0
    %v89 = vmax.f32 %v85, 0.0
    %v90 = vmax.f32 %v87, 0.0
    %v91 = vpack.c.bf16 %v90, %v89
    %v92 = vld [vmem:[%s3] sm:$0xf]
    %v93 = vld [vmem:[%s3 + $0x4] sm:$0xf]
    %v94 = vld [vmem:[%s3 + $0x8] sm:$0xf]
    %v95 = vld [vmem:[%s3 + $0xc] sm:$0xf]
    %v96 = vld [vmem:[%s3 + $0x10] sm:$0xf]
    %v97 = vld [vmem:[%s3 + $0x14] sm:$0xf]
    %v98 = vld [vmem:[%s3 + $0x18] sm:$0xf]
    %v99 = vld [vmem:[%s3 + $0x1c] sm:$0xf]
    %v100 = vld [vmem:[%s4] sm:$0x1]
    %v102 = vperm.slane %v100, 0
    %v112 = vunpack.c.l.b16 %v92
    %v113 = vunpack.c.l.b16 %v93
    %v114 = vunpack.c.l.b16 %v94
    %v115 = vunpack.c.l.b16 %v95
    %v116 = vunpack.c.l.b16 %v96
    %v117 = vunpack.c.l.b16 %v97
    %v118 = vunpack.c.l.b16 %v98
    %v119 = vunpack.c.l.b16 %v99
    %v120 = vpack.c.b16 %v113, %v112
    %v121 = vpack.c.b16 %v115, %v114
    %v122 = vpack.c.b16 %v117, %v116
    %v123 = vpack.c.b16 %v119, %v118
    %vm128 = vcmask 523264
    %v130 = vsel %vm128, %v91, 0
    %132 = vmatpush.bf16.msra.mxu0 0
    %133 = vmatpush.bf16.msra.mxu0 0
    %134 = vmatpush.bf16.msra.mxu0 0
    %135 = vmatpush.bf16.msra.mxu0 0
    %136 = vmatpush.bf16.msra.mxu0 %v123
    %137 = vmatpush.bf16.msra.mxu0 %v122
    %138 = vmatpush.bf16.msra.mxu0 %v121
    %139 = vmatpush.bf16.msra.mxu0 %v120
    %140 = vmatmul.bf16.gmra.mxu0 %v130
    %v141 = vpop.f32.mrf.mxu0
    %v142 = vadd.f32 %v102, %v141
    %v143 = vpop.f32.mrf.mxu0
    %v144 = vadd.f32 %v102, %v143
    %145 = vdwg.mxu0
    %v146 = vtanh.pop %v142
    %v147 = vtanh.pop %v144
    %v148 = vpack.c.bf16 %v147, %v146
    %v149 = vld [vmem:[%s5] sm:$0xf]
    %v150 = vld [vmem:[%s5 + $0x4] sm:$0xf]
    %v151 = vld [vmem:[%s5 + $0x8] sm:$0xf]
    %v152 = vld [vmem:[%s5 + $0xc] sm:$0xf]
    %v153 = vld [vmem:[%s5 + $0x10] sm:$0xf]
    %v154 = vld [vmem:[%s5 + $0x14] sm:$0xf]
    %v155 = vld [vmem:[%s5 + $0x18] sm:$0xf]
    %v156 = vld [vmem:[%s5 + $0x1c] sm:$0xf]
    %v157 = vld [vmem:[%s6] sm:$0x1]
    %v159 = vperm.slane %v157, 0
    %v169 = vunpack.c.l.b16 %v149
    %v170 = vunpack.c.l.b16 %v150
    %v171 = vunpack.c.l.b16 %v151
    %v172 = vunpack.c.l.b16 %v152
    %v173 = vunpack.c.l.b16 %v153
    %v174 = vunpack.c.l.b16 %v154
    %v175 = vunpack.c.l.b16 %v155
    %v176 = vunpack.c.l.b16 %v156
    %v177 = vpack.c.b16 %v170, %v169
    %v178 = vpack.c.b16 %v172, %v171
    %v179 = vpack.c.b16 %v174, %v173
    %v180 = vpack.c.b16 %v176, %v175
    %v186 = vsel %vm128, %v148, 0
    %188 = vmatpush.bf16.msra.mxu0 0
    %189 = vmatpush.bf16.msra.mxu0 0
    %190 = vmatpush.bf16.msra.mxu0 0
    %191 = vmatpush.bf16.msra.mxu0 0
    %192 = vmatpush.bf16.msra.mxu0 %v180
    %193 = vmatpush.bf16.msra.mxu0 %v179
    %194 = vmatpush.bf16.msra.mxu0 %v178
    %195 = vmatpush.bf16.msra.mxu0 %v177
    %196 = vmatmul.bf16.gmra.mxu0 %v186
    %v197 = vpop.f32.mrf.mxu0
    %v198 = vadd.f32 %v159, %v197
    %v199 = vpop.f32.mrf.mxu0
    %v200 = vadd.f32 %v159, %v199
    %201 = vdwg.mxu0
    %v202 = vmax.f32 %v198, 0.0
    %v203 = vmax.f32 %v200, 0.0
    %vm204 = vcmask 130048
    %205 = vst.msk [vmem:[#allocation5] sm:$0xff] %vm204, %v202
    %206 = vst.msk [vmem:[#allocation5 + $0x8] sm:$0xff] %vm204, %v203
    // Predicated region
    $region34: #{tpu_custom_call.1} parent=1 // pred_check
      _
    $region35: #{tpu_custom_call.1} parent=1 // pred_check_branch
      %208 = sbr.rel (0) target = $region37
    $region36: #{tpu_custom_call.1} parent=1 // pred_region
      %210 = vsyncadd [#allocation4], 0
      %s211 = sshll.u32 [#allocation5], 4
      %s212 = int_to_ptr.vmem [resolvable:$true] %s211
      %s213 = sshll.u32 %s7, 4
      %s214 = int_to_ptr.hbm [resolvable:$true] %s213
      %219 = dma.vmem_to_hbm [thread:$0]  %s212, 256, %s214, [#allocation4], 128, 128, 8
    $region37: #{tpu_custom_call.1} parent=1 // pred_fallthru
      _
    // Predicated region
    $region38: #{tpu_custom_call.1} parent=1 // pred_check
      _
    $region39: #{tpu_custom_call.1} parent=1 // pred_check_branch
      %221 = sbr.rel (0) target = $region41
    $region40: #{tpu_custom_call.1} parent=1 // pred_region
      %223 = dma.done [#allocation4], 256
    $region41: #{tpu_custom_call.1} parent=1 // pred_fallthru
      _
    %224 = vsyncpa [#allocation3], 1
    %225 = vsyncpa [#allocation4], 1

</llo_original>
